<compile_context>
chip_gen: v6e
topology: v6e:2x2x1
jax: 0.10.0
libtpu: 0.0.40
codegen_flags: <defaults>
</compile_context>

<pallas_src>
import functools

import jax
import jax.numpy as jnp
from jax.experimental import pallas as pl
from jax.experimental.pallas import tpu as pltpu


def _hardswish_like(v):
    # v * hardtanh(v + 3, 0, 6) / 6   (the module's extra clamp(0,6) is idempotent)
    return v * jnp.clip(v + 3.0, 0.0, 6.0) * (1.0 / 6.0)


def _fused_kernel(x1_ref, x2_ref, w_ref, b_ref, o_ref):
    # x1_ref, x2_ref : (C_in,  R, 128)  VMEM, fully lane/sublane dense
    # w_ref          : (C_out, C_in)    SMEM scalars
    # b_ref          : (C_out,)         SMEM scalars
    # o_ref          : (C_out, R, 128)  VMEM, dense unmasked stores
    x1 = x1_ref[...]
    x2 = x2_ref[...]
    c_in = x1.shape[0]
    c_out = o_ref.shape[0]

    # Degenerate-K (C_in=2) contraction: unrolled VPU scalar-MAC, not the MXU.
    for c in range(c_out):                 # static unroll; C_out == 3
        v = x1[0] * w_ref[c, 0]
        u = x2[0] * w_ref[c, 0]
        for i in range(1, c_in):           # static unroll; C_in == 2
            v = v + x1[i] * w_ref[c, i]
            u = u + x2[i] * w_ref[c, i]
        b_c = b_ref[c]
        v = v + b_c
        u = u + b_c
        o_ref[c] = (_hardswish_like(v) + _hardswish_like(u)).astype(o_ref.dtype)


def _round_up(x, m):
    return ((x + m - 1) // m) * m


def _pick_row_tile(rows, n_batch, target_rows, min_parallel_steps=4):
    """Rows (of 128 lanes) per grid step: multiple of 8, or the full extent."""
    if rows <= 8:
        return rows
    r = max(8, (min(target_rows, rows) // 8) * 8)
    # Shrink the spatial tile (never below 8 sublane-rows) until the grid has
    # enough parallel steps to occupy both v7x TensorCores.
    while r > 8 and n_batch * pl.cdiv(rows, r) < min_parallel_steps:
        r = max(8, ((r // 2) // 8) * 8)
    return r


@functools.partial(jax.jit, static_argnames=("target_rows",))
def fused_conv_hardswish_sum(x1, x2, weight, bias, *, target_rows=256):
    """x1, x2: (N, C_in, H, W) f32; weight: (C_out, C_in, 1, 1); bias: (C_out,).

    Returns (N, C_out, H+2, W+2), matching Conv2d(C_in, C_out, 1, padding=1)
    followed by the hardswish-like fusion applied to both inputs and summed.
    """
    N, C_in, H, W = x1.shape
    C_out = weight.shape[0]
    M = H * W
    M_pad = _round_up(M, 128)

    x1f = x1.reshape(N, C_in, M).astype(jnp.float32)
    x2f = x2.reshape(N, C_in, M).astype(jnp.float32)
    if M_pad != M:
        # Rare: only when H*W is not lane-aligned does the tail get padded.
        x1f = jnp.pad(x1f, ((0, 0), (0, 0), (0, M_pad - M)))
        x2f = jnp.pad(x2f, ((0, 0), (0, 0), (0, M_pad - M)))

    rows = M_pad // 128
    x1v = x1f.reshape(N, C_in, rows, 128)
    x2v = x2f.reshape(N, C_in, rows, 128)

    R = _pick_row_tile(rows, N, target_rows)
    grid = (N, pl.cdiv(rows, R))

    w2d = weight.reshape(C_out, C_in).astype(jnp.float32)
    b1d = bias.reshape(C_out).astype(jnp.float32)

    out = pl.pallas_call(
        _fused_kernel,
        out_shape=jax.ShapeDtypeStruct((N, C_out, rows, 128), jnp.float32),
        grid_spec=pltpu.PrefetchScalarGridSpec(
            num_scalar_prefetch=0,
            grid=grid,
            in_specs=[
                pl.BlockSpec((pl.Squeezed(), C_in, R, 128),
                             lambda n, i: (n, 0, i, 0)),
                pl.BlockSpec((pl.Squeezed(), C_in, R, 128),
                             lambda n, i: (n, 0, i, 0)),
                pl.BlockSpec(memory_space=pltpu.MemorySpace.SMEM),   # weight
                pl.BlockSpec(memory_space=pltpu.MemorySpace.SMEM),   # bias
            ],
            out_specs=pl.BlockSpec((pl.Squeezed(), C_out, R, 128),
                                   lambda n, i: (n, 0, i, 0)),
        ),
        compiler_params=pltpu.CompilerParams(
            dimension_semantics=("parallel", "parallel"),
        ),
    )(x1v, x2v, w2d, b1d)

    core = out.reshape(N, C_out, M_pad)[:, :, :M].reshape(N, C_out, H, W)

    # padding=1 with a 1x1 kernel: the conv output on the 1-pixel border is
    # exactly `bias`, so the fused border value is 2*hardswish(bias).
    border = 2.0 * _hardswish_like(b1d)
    Hp, Wp = H + 2, W + 2
    full = jnp.broadcast_to(border[None, :, None, None], (N, C_out, Hp, Wp))
    return full.at[:, :, 1:-1, 1:-1].set(core)


def reference(x1, x2, weight, bias):
    """Pure-JAX reference of the PyTorch forward."""
    def conv(x):
        y = jax.lax.conv_general_dilated(
            x, weight, window_strides=(1, 1), padding=((1, 1), (1, 1)),
            dimension_numbers=("NCHW", "OIHW", "NCHW"))
        return y + bias.reshape(1, -1, 1, 1)

    def branch(x):
        v1 = conv(x)
        v3 = jnp.clip(v1 + 3.0, 0.0, 6.0)   # hardtanh(0,6); extra clamp idempotent
        return v1 * v3 / 6.0

    return branch(x1) + branch(x2)


if __name__ == "__main__":
    key = jax.random.PRNGKey(0)
    k1, k2, kw, kb = jax.random.split(key, 4)

    N, C_in, H, W = 2, 2, 64, 64
    C_out = 3

    x1 = jax.random.normal(k1, (N, C_in, H, W), dtype=jnp.float32)
    x2 = jax.random.normal(k2, (N, C_in, H, W), dtype=jnp.float32)
    # deterministic Conv2d(2, 3, 1) parameters
    weight = 0.1 * jax.random.normal(kw, (C_out, C_in, 1, 1), dtype=jnp.float32)
    bias = 0.1 * jax.random.normal(kb, (C_out,), dtype=jnp.float32)

    out = jax.block_until_ready(fused_conv_hardswish_sum(x1, x2, weight, bias))
    ref = jax.block_until_ready(reference(x1, x2, weight, bias))

    assert out.shape == (N, C_out, H + 2, W + 2), out.shape
    err = float(jnp.max(jnp.abs(out - ref)))
    assert jnp.allclose(out, ref, atol=1e-5, rtol=1e-5), err

    print("KERNEL_OK")
</pallas_src>

<mosaic_0001>
module attributes {stable_mosaic.version = 11 : i64} {
  func.func @_fused_kernel(%arg0: i32, %arg1: i32, %arg2: memref<1x2x16x128xf32, #tpu.memory_space<vmem>>, %arg3: memref<1x2x16x128xf32, #tpu.memory_space<vmem>>, %arg4: memref<3x2xf32, #tpu.memory_space<smem>>, %arg5: memref<3xf32, #tpu.memory_space<smem>>, %arg6: memref<1x3x16x128xf32, #tpu.memory_space<vmem>>) attributes {dimension_semantics = [#tpu.dimension_semantics<parallel>, #tpu.dimension_semantics<parallel>], iteration_bounds = array<i64: 2, 2>, scalar_prefetch = 0 : i64, scratch_operands = 0 : i64, tpu.core_type = #tpu.core_type<tc>, window_params = [{transform_indices = @transform_0, window_bounds = array<i64: 1, 2, 16, 128>}, {transform_indices = @transform_1, window_bounds = array<i64: 1, 2, 16, 128>}, {transform_indices = @transform_2, window_bounds = array<i64: 3, 2>}, {transform_indices = @transform_3, window_bounds = array<i64: 3>}, {transform_indices = @transform_4, window_bounds = array<i64: 1, 3, 16, 128>}]} {
    %c0 = arith.constant 0 : index
    %c0_0 = arith.constant 0 : index
    %c0_1 = arith.constant 0 : index
    %c0_2 = arith.constant 0 : index
    %0 = vector.load %arg2[%c0, %c0_0, %c0_1, %c0_2] : memref<1x2x16x128xf32, #tpu.memory_space<vmem>>, vector<1x2x16x128xf32>
    %1 = vector.shape_cast %0 : vector<1x2x16x128xf32> to vector<2x16x128xf32>
    %c0_3 = arith.constant 0 : index
    %c0_4 = arith.constant 0 : index
    %c0_5 = arith.constant 0 : index
    %c0_6 = arith.constant 0 : index
    %2 = vector.load %arg3[%c0_3, %c0_4, %c0_5, %c0_6] : memref<1x2x16x128xf32, #tpu.memory_space<vmem>>, vector<1x2x16x128xf32>
    %3 = vector.shape_cast %2 : vector<1x2x16x128xf32> to vector<2x16x128xf32>
    %4 = vector.extract_strided_slice %1 {offsets = [0, 0, 0], sizes = [1, 16, 128], strides = [1, 1, 1]} : vector<2x16x128xf32> to vector<1x16x128xf32>
    %5 = vector.shape_cast %4 : vector<1x16x128xf32> to vector<16x128xf32>
    %c0_7 = arith.constant 0 : index
    %c0_8 = arith.constant 0 : index
    %6 = memref.load %arg4[%c0_7, %c0_8] : memref<3x2xf32, #tpu.memory_space<smem>>
    %7 = vector.broadcast %6 : f32 to vector<16x128xf32>
    %8 = arith.mulf %5, %7 : vector<16x128xf32>
    %9 = vector.extract_strided_slice %3 {offsets = [0, 0, 0], sizes = [1, 16, 128], strides = [1, 1, 1]} : vector<2x16x128xf32> to vector<1x16x128xf32>
    %10 = vector.shape_cast %9 : vector<1x16x128xf32> to vector<16x128xf32>
    %c0_9 = arith.constant 0 : index
    %c0_10 = arith.constant 0 : index
    %11 = memref.load %arg4[%c0_9, %c0_10] : memref<3x2xf32, #tpu.memory_space<smem>>
    %12 = vector.broadcast %11 : f32 to vector<16x128xf32>
    %13 = arith.mulf %10, %12 : vector<16x128xf32>
    %14 = vector.extract_strided_slice %1 {offsets = [1, 0, 0], sizes = [1, 16, 128], strides = [1, 1, 1]} : vector<2x16x128xf32> to vector<1x16x128xf32>
    %15 = vector.shape_cast %14 : vector<1x16x128xf32> to vector<16x128xf32>
    %c0_11 = arith.constant 0 : index
    %c1 = arith.constant 1 : index
    %16 = memref.load %arg4[%c0_11, %c1] : memref<3x2xf32, #tpu.memory_space<smem>>
    %17 = vector.broadcast %16 : f32 to vector<16x128xf32>
    %18 = arith.mulf %15, %17 : vector<16x128xf32>
    %19 = arith.addf %8, %18 : vector<16x128xf32>
    %20 = vector.extract_strided_slice %3 {offsets = [1, 0, 0], sizes = [1, 16, 128], strides = [1, 1, 1]} : vector<2x16x128xf32> to vector<1x16x128xf32>
    %21 = vector.shape_cast %20 : vector<1x16x128xf32> to vector<16x128xf32>
    %c0_12 = arith.constant 0 : index
    %c1_13 = arith.constant 1 : index
    %22 = memref.load %arg4[%c0_12, %c1_13] : memref<3x2xf32, #tpu.memory_space<smem>>
    %23 = vector.broadcast %22 : f32 to vector<16x128xf32>
    %24 = arith.mulf %21, %23 : vector<16x128xf32>
    %25 = arith.addf %13, %24 : vector<16x128xf32>
    %c0_14 = arith.constant 0 : index
    %26 = memref.load %arg5[%c0_14] : memref<3xf32, #tpu.memory_space<smem>>
    %27 = vector.broadcast %26 : f32 to vector<16x128xf32>
    %28 = arith.addf %19, %27 : vector<16x128xf32>
    %29 = vector.broadcast %26 : f32 to vector<16x128xf32>
    %30 = arith.addf %25, %29 : vector<16x128xf32>
    %cst = arith.constant 3.000000e+00 : f32
    %31 = vector.broadcast %cst : f32 to vector<16x128xf32>
    %32 = arith.addf %28, %31 : vector<16x128xf32>
    %cst_15 = arith.constant 0.000000e+00 : f32
    %cst_16 = arith.constant 6.000000e+00 : f32
    %33 = vector.broadcast %cst_15 : f32 to vector<16x128xf32>
    %34 = arith.maximumf %33, %32 : vector<16x128xf32>
    %35 = vector.broadcast %cst_16 : f32 to vector<16x128xf32>
    %36 = arith.minimumf %35, %34 : vector<16x128xf32>
    %37 = arith.mulf %28, %36 : vector<16x128xf32>
    %cst_17 = arith.constant 0.166666672 : f32
    %38 = vector.broadcast %cst_17 : f32 to vector<16x128xf32>
    %39 = arith.mulf %37, %38 : vector<16x128xf32>
    %cst_18 = arith.constant 3.000000e+00 : f32
    %40 = vector.broadcast %cst_18 : f32 to vector<16x128xf32>
    %41 = arith.addf %30, %40 : vector<16x128xf32>
    %cst_19 = arith.constant 0.000000e+00 : f32
    %cst_20 = arith.constant 6.000000e+00 : f32
    %42 = vector.broadcast %cst_19 : f32 to vector<16x128xf32>
    %43 = arith.maximumf %42, %41 : vector<16x128xf32>
    %44 = vector.broadcast %cst_20 : f32 to vector<16x128xf32>
    %45 = arith.minimumf %44, %43 : vector<16x128xf32>
    %46 = arith.mulf %30, %45 : vector<16x128xf32>
    %cst_21 = arith.constant 0.166666672 : f32
    %47 = vector.broadcast %cst_21 : f32 to vector<16x128xf32>
    %48 = arith.mulf %46, %47 : vector<16x128xf32>
    %49 = arith.addf %39, %48 : vector<16x128xf32>
    %c0_22 = arith.constant 0 : index
    %c0_23 = arith.constant 0 : index
    %c0_24 = arith.constant 0 : index
    %c0_25 = arith.constant 0 : index
    %50 = vector.load %arg6[%c0_22, %c0_23, %c0_24, %c0_25] : memref<1x3x16x128xf32, #tpu.memory_space<vmem>>, vector<1x1x16x128xf32>
    %51 = vector.shape_cast %50 : vector<1x1x16x128xf32> to vector<16x128xf32>
    %52 = vector.shape_cast %49 : vector<16x128xf32> to vector<1x1x16x128xf32>
    tpu.vector_store %arg6[%c0_22, %c0_23, %c0_24, %c0_25], %52 {strides = array<i32>} : memref<1x3x16x128xf32, #tpu.memory_space<vmem>>, vector<1x1x16x128xf32>,
    %53 = vector.extract_strided_slice %1 {offsets = [0, 0, 0], sizes = [1, 16, 128], strides = [1, 1, 1]} : vector<2x16x128xf32> to vector<1x16x128xf32>
    %54 = vector.shape_cast %53 : vector<1x16x128xf32> to vector<16x128xf32>
    %c1_26 = arith.constant 1 : index
    %c0_27 = arith.constant 0 : index
    %55 = memref.load %arg4[%c1_26, %c0_27] : memref<3x2xf32, #tpu.memory_space<smem>>
    %56 = vector.broadcast %55 : f32 to vector<16x128xf32>
    %57 = arith.mulf %54, %56 : vector<16x128xf32>
    %58 = vector.extract_strided_slice %3 {offsets = [0, 0, 0], sizes = [1, 16, 128], strides = [1, 1, 1]} : vector<2x16x128xf32> to vector<1x16x128xf32>
    %59 = vector.shape_cast %58 : vector<1x16x128xf32> to vector<16x128xf32>
    %c1_28 = arith.constant 1 : index
    %c0_29 = arith.constant 0 : index
    %60 = memref.load %arg4[%c1_28, %c0_29] : memref<3x2xf32, #tpu.memory_space<smem>>
    %61 = vector.broadcast %60 : f32 to vector<16x128xf32>
    %62 = arith.mulf %59, %61 : vector<16x128xf32>
    %63 = vector.extract_strided_slice %1 {offsets = [1, 0, 0], sizes = [1, 16, 128], strides = [1, 1, 1]} : vector<2x16x128xf32> to vector<1x16x128xf32>
    %64 = vector.shape_cast %63 : vector<1x16x128xf32> to vector<16x128xf32>
    %c1_30 = arith.constant 1 : index
    %c1_31 = arith.constant 1 : index
    %65 = memref.load %arg4[%c1_30, %c1_31] : memref<3x2xf32, #tpu.memory_space<smem>>
    %66 = vector.broadcast %65 : f32 to vector<16x128xf32>
    %67 = arith.mulf %64, %66 : vector<16x128xf32>
    %68 = arith.addf %57, %67 : vector<16x128xf32>
    %69 = vector.extract_strided_slice %3 {offsets = [1, 0, 0], sizes = [1, 16, 128], strides = [1, 1, 1]} : vector<2x16x128xf32> to vector<1x16x128xf32>
    %70 = vector.shape_cast %69 : vector<1x16x128xf32> to vector<16x128xf32>
    %c1_32 = arith.constant 1 : index
    %c1_33 = arith.constant 1 : index
    %71 = memref.load %arg4[%c1_32, %c1_33] : memref<3x2xf32, #tpu.memory_space<smem>>
    %72 = vector.broadcast %71 : f32 to vector<16x128xf32>
    %73 = arith.mulf %70, %72 : vector<16x128xf32>
    %74 = arith.addf %62, %73 : vector<16x128xf32>
    %c1_34 = arith.constant 1 : index
    %75 = memref.load %arg5[%c1_34] : memref<3xf32, #tpu.memory_space<smem>>
    %76 = vector.broadcast %75 : f32 to vector<16x128xf32>
    %77 = arith.addf %68, %76 : vector<16x128xf32>
    %78 = vector.broadcast %75 : f32 to vector<16x128xf32>
    %79 = arith.addf %74, %78 : vector<16x128xf32>
    %cst_35 = arith.constant 3.000000e+00 : f32
    %80 = vector.broadcast %cst_35 : f32 to vector<16x128xf32>
    %81 = arith.addf %77, %80 : vector<16x128xf32>
    %cst_36 = arith.constant 0.000000e+00 : f32
    %cst_37 = arith.constant 6.000000e+00 : f32
    %82 = vector.broadcast %cst_36 : f32 to vector<16x128xf32>
    %83 = arith.maximumf %82, %81 : vector<16x128xf32>
    %84 = vector.broadcast %cst_37 : f32 to vector<16x128xf32>
    %85 = arith.minimumf %84, %83 : vector<16x128xf32>
    %86 = arith.mulf %77, %85 : vector<16x128xf32>
    %cst_38 = arith.constant 0.166666672 : f32
    %87 = vector.broadcast %cst_38 : f32 to vector<16x128xf32>
    %88 = arith.mulf %86, %87 : vector<16x128xf32>
    %cst_39 = arith.constant 3.000000e+00 : f32
    %89 = vector.broadcast %cst_39 : f32 to vector<16x128xf32>
    %90 = arith.addf %79, %89 : vector<16x128xf32>
    %cst_40 = arith.constant 0.000000e+00 : f32
    %cst_41 = arith.constant 6.000000e+00 : f32
    %91 = vector.broadcast %cst_40 : f32 to vector<16x128xf32>
    %92 = arith.maximumf %91, %90 : vector<16x128xf32>
    %93 = vector.broadcast %cst_41 : f32 to vector<16x128xf32>
    %94 = arith.minimumf %93, %92 : vector<16x128xf32>
    %95 = arith.mulf %79, %94 : vector<16x128xf32>
    %cst_42 = arith.constant 0.166666672 : f32
    %96 = vector.broadcast %cst_42 : f32 to vector<16x128xf32>
    %97 = arith.mulf %95, %96 : vector<16x128xf32>
    %98 = arith.addf %88, %97 : vector<16x128xf32>
    %c0_43 = arith.constant 0 : index
    %c1_44 = arith.constant 1 : index
    %c0_45 = arith.constant 0 : index
    %c0_46 = arith.constant 0 : index
    %99 = vector.load %arg6[%c0_43, %c1_44, %c0_45, %c0_46] : memref<1x3x16x128xf32, #tpu.memory_space<vmem>>, vector<1x1x16x128xf32>
    %100 = vector.shape_cast %99 : vector<1x1x16x128xf32> to vector<16x128xf32>
    %101 = vector.shape_cast %98 : vector<16x128xf32> to vector<1x1x16x128xf32>
    tpu.vector_store %arg6[%c0_43, %c1_44, %c0_45, %c0_46], %101 {strides = array<i32>} : memref<1x3x16x128xf32, #tpu.memory_space<vmem>>, vector<1x1x16x128xf32>,
    %102 = vector.extract_strided_slice %1 {offsets = [0, 0, 0], sizes = [1, 16, 128], strides = [1, 1, 1]} : vector<2x16x128xf32> to vector<1x16x128xf32>
    %103 = vector.shape_cast %102 : vector<1x16x128xf32> to vector<16x128xf32>
    %c2 = arith.constant 2 : index
    %c0_47 = arith.constant 0 : index
    %104 = memref.load %arg4[%c2, %c0_47] : memref<3x2xf32, #tpu.memory_space<smem>>
    %105 = vector.broadcast %104 : f32 to vector<16x128xf32>
    %106 = arith.mulf %103, %105 : vector<16x128xf32>
    %107 = vector.extract_strided_slice %3 {offsets = [0, 0, 0], sizes = [1, 16, 128], strides = [1, 1, 1]} : vector<2x16x128xf32> to vector<1x16x128xf32>
    %108 = vector.shape_cast %107 : vector<1x16x128xf32> to vector<16x128xf32>
    %c2_48 = arith.constant 2 : index
    %c0_49 = arith.constant 0 : index
    %109 = memref.load %arg4[%c2_48, %c0_49] : memref<3x2xf32, #tpu.memory_space<smem>>
    %110 = vector.broadcast %109 : f32 to vector<16x128xf32>
    %111 = arith.mulf %108, %110 : vector<16x128xf32>
    %112 = vector.extract_strided_slice %1 {offsets = [1, 0, 0], sizes = [1, 16, 128], strides = [1, 1, 1]} : vector<2x16x128xf32> to vector<1x16x128xf32>
    %113 = vector.shape_cast %112 : vector<1x16x128xf32> to vector<16x128xf32>
    %c2_50 = arith.constant 2 : index
    %c1_51 = arith.constant 1 : index
    %114 = memref.load %arg4[%c2_50, %c1_51] : memref<3x2xf32, #tpu.memory_space<smem>>
    %115 = vector.broadcast %114 : f32 to vector<16x128xf32>
    %116 = arith.mulf %113, %115 : vector<16x128xf32>
    %117 = arith.addf %106, %116 : vector<16x128xf32>
    %118 = vector.extract_strided_slice %3 {offsets = [1, 0, 0], sizes = [1, 16, 128], strides = [1, 1, 1]} : vector<2x16x128xf32> to vector<1x16x128xf32>
    %119 = vector.shape_cast %118 : vector<1x16x128xf32> to vector<16x128xf32>
    %c2_52 = arith.constant 2 : index
    %c1_53 = arith.constant 1 : index
    %120 = memref.load %arg4[%c2_52, %c1_53] : memref<3x2xf32, #tpu.memory_space<smem>>
    %121 = vector.broadcast %120 : f32 to vector<16x128xf32>
    %122 = arith.mulf %119, %121 : vector<16x128xf32>
    %123 = arith.addf %111, %122 : vector<16x128xf32>
    %c2_54 = arith.constant 2 : index
    %124 = memref.load %arg5[%c2_54] : memref<3xf32, #tpu.memory_space<smem>>
    %125 = vector.broadcast %124 : f32 to vector<16x128xf32>
    %126 = arith.addf %117, %125 : vector<16x128xf32>
    %127 = vector.broadcast %124 : f32 to vector<16x128xf32>
    %128 = arith.addf %123, %127 : vector<16x128xf32>
    %cst_55 = arith.constant 3.000000e+00 : f32
    %129 = vector.broadcast %cst_55 : f32 to vector<16x128xf32>
    %130 = arith.addf %126, %129 : vector<16x128xf32>
    %cst_56 = arith.constant 0.000000e+00 : f32
    %cst_57 = arith.constant 6.000000e+00 : f32
    %131 = vector.broadcast %cst_56 : f32 to vector<16x128xf32>
    %132 = arith.maximumf %131, %130 : vector<16x128xf32>
    %133 = vector.broadcast %cst_57 : f32 to vector<16x128xf32>
    %134 = arith.minimumf %133, %132 : vector<16x128xf32>
    %135 = arith.mulf %126, %134 : vector<16x128xf32>
    %cst_58 = arith.constant 0.166666672 : f32
    %136 = vector.broadcast %cst_58 : f32 to vector<16x128xf32>
    %137 = arith.mulf %135, %136 : vector<16x128xf32>
    %cst_59 = arith.constant 3.000000e+00 : f32
    %138 = vector.broadcast %cst_59 : f32 to vector<16x128xf32>
    %139 = arith.addf %128, %138 : vector<16x128xf32>
    %cst_60 = arith.constant 0.000000e+00 : f32
    %cst_61 = arith.constant 6.000000e+00 : f32
    %140 = vector.broadcast %cst_60 : f32 to vector<16x128xf32>
    %141 = arith.maximumf %140, %139 : vector<16x128xf32>
    %142 = vector.broadcast %cst_61 : f32 to vector<16x128xf32>
    %143 = arith.minimumf %142, %141 : vector<16x128xf32>
    %144 = arith.mulf %128, %143 : vector<16x128xf32>
    %cst_62 = arith.constant 0.166666672 : f32
    %145 = vector.broadcast %cst_62 : f32 to vector<16x128xf32>
    %146 = arith.mulf %144, %145 : vector<16x128xf32>
    %147 = arith.addf %137, %146 : vector<16x128xf32>
    %c0_63 = arith.constant 0 : index
    %c2_64 = arith.constant 2 : index
    %c0_65 = arith.constant 0 : index
    %c0_66 = arith.constant 0 : index
    %148 = vector.load %arg6[%c0_63, %c2_64, %c0_65, %c0_66] : memref<1x3x16x128xf32, #tpu.memory_space<vmem>>, vector<1x1x16x128xf32>
    %149 = vector.shape_cast %148 : vector<1x1x16x128xf32> to vector<16x128xf32>
    %150 = vector.shape_cast %147 : vector<16x128xf32> to vector<1x1x16x128xf32>
    tpu.vector_store %arg6[%c0_63, %c2_64, %c0_65, %c0_66], %150 {strides = array<i32>} : memref<1x3x16x128xf32, #tpu.memory_space<vmem>>, vector<1x1x16x128xf32>,
    return
  }
  func.func @transform_0(%arg0: i32, %arg1: i32) -> (i32, i32, i32, i32) {
    %c0_i32 = arith.constant 0 : i32
    %c0_i32_0 = arith.constant 0 : i32
    %c0_i32_1 = arith.constant 0 : i32
    return %arg0, %c0_i32, %arg1, %c0_i32_0 : i32, i32, i32, i32
  }
  func.func @transform_1(%arg0: i32, %arg1: i32) -> (i32, i32, i32, i32) {
    %c0_i32 = arith.constant 0 : i32
    %c0_i32_0 = arith.constant 0 : i32
    %c0_i32_1 = arith.constant 0 : i32
    return %arg0, %c0_i32, %arg1, %c0_i32_0 : i32, i32, i32, i32
  }
  func.func @transform_2(%arg0: i32, %arg1: i32) -> (i32, i32) {
    %c0_i32 = arith.constant 0 : i32
    %c0_i32_0 = arith.constant 0 : i32
    %c0_i32_1 = arith.constant 0 : i32
    return %c0_i32, %c0_i32_0 : i32, i32
  }
  func.func @transform_3(%arg0: i32, %arg1: i32) -> i32 {
    %c0_i32 = arith.constant 0 : i32
    %c0_i32_0 = arith.constant 0 : i32
    return %c0_i32 : i32
  }
  func.func @transform_4(%arg0: i32, %arg1: i32) -> (i32, i32, i32, i32) {
    %c0_i32 = arith.constant 0 : i32
    %c0_i32_0 = arith.constant 0 : i32
    %c0_i32_1 = arith.constant 0 : i32
    return %arg0, %c0_i32, %arg1, %c0_i32_0 : i32, i32, i32, i32
  }
}

</mosaic_0001>

<llo_original>
// kernel: fused_conv_hardswish_sum.1
$region0: #{fused_conv_hardswish_sum.1}
  #allocation0 [shape = 'u32[]', space=smem, size = 0x4, offset = 0x4, fixed_abs, tag = 'smem constant byte address 0x4 - core index']
  #allocation1 [shape = 'u32[144,128]{1,0:T(1,128)}', space=vmem, size = 0x12000, scoped, tag = 'internal scratch']
  %s0 = inlined_call_operand.vmem [shape: f32[2,2,32,128], index: 0, kind: input, shape index: {}]
  %s1 = inlined_call_operand.vmem [shape: f32[2,2,32,128], index: 1, kind: input, shape index: {}]
  %s2 = inlined_call_operand.vmem [shape: f32[3,2], index: 2, kind: input, shape index: {}]
  %s3 = inlined_call_operand.vmem [shape: f32[3], index: 3, kind: input, shape index: {}]
  %s4 = inlined_call_operand.vmem [shape: f32[2,3,32,128], index: 4, kind: output, shape index: {}]
  %s5 = sld [smem:[#allocation0]]
  $region167: #{fused_conv_hardswish_sum.1} parent=0
    _
  %s7 = ssub.s32 1, %s5
  %s8 = scalar_select 0, %s7, %s5
  $region1: #{fused_conv_hardswish_sum.1} parent=0
    #allocation2 [shape = 'u8[32768]{0}', space=vmem, size = 0x8000, scoped, tag = 'input window, operand 0']
    #allocation3 [shape = 'u8[32768]{0}', space=vmem, size = 0x8000, scoped, tag = 'input window, operand 1']
    #allocation4 [shape = 'u8[2048]{0}', space=smem, size = 0x800, scoped, tag = 'input window, operand 2, single buffered']
    #allocation5 [shape = 's32[2]{0}', space=sflag, size = 0x8, scoped, tag = 'scoped memory for fused_conv_hardswish_sum.1']
    #allocation6 [shape = 'u8[512]{0}', space=smem, size = 0x200, scoped, tag = 'input window, operand 3, single buffered']
    #allocation7 [shape = 's32[1]{0}', space=sflag, size = 0x4, scoped, tag = 'scoped memory for fused_conv_hardswish_sum.1']
    #allocation8 [shape = 'u8[49152]{0}', space=vmem, size = 0xc000, scoped, tag = 'output window, operand 0']
    %9 = vsyncpa [#allocation5], 0
    %10 = vsyncpa [#allocation7], 0
    loop: start=0, step=1, limit=6
    $region2: #{fused_conv_hardswish_sum.1} parent=1 // loop_pre_header
      _
    $region3: #{fused_conv_hardswish_sum.1} parent=1 // loop_header
      %s12 = sphi 0, %s16
      %p13 = scmp.ge.s32.totalorder %s12, 6
      %s19 = sphi 0, %s31
      %s20 = sphi 0, %s27
      %s21 = sphi 0, %s19
      %s22 = sphi 0, %s20
      %s23 = sphi 0, %s21
      %s24 = sphi 0, %s22
      %s36 = sphi 0, %s38
      %s39 = sphi 0, %s36
      %s40 = sphi 0, %s39
      %s56 = sphi 0, %s40
      %s64 = sphi 0, %s66
      %s67 = sphi 0, %s64
      %s68 = sphi 0, %s67
      %s84 = sphi 0, %s68
      %s88 = sphi 0, %s88
      %s90 = sphi 0, %s88
      %s91 = sphi 0, %s90
      %s105 = sphi 0, %s91
      %s109 = sphi 0, %s109
      %s111 = sphi 0, %s109
      %s112 = sphi 0, %s111
      %s126 = sphi 0, %s112
      %s134 = sphi 0, %s136
      %s137 = sphi 0, %s134
      %s138 = sphi 0, %s137
      %s154 = sphi 0, %s138
    $region4: #{fused_conv_hardswish_sum.1} parent=1 // loop_header_branch
      %15 = sbr.rel (%p13) target = $region8
    $region5: #{fused_conv_hardswish_sum.1} parent=1 // loop_body
      %s17 = ssub.s32 %s12, 1
      %s18 = ssub.s32 %s12, 2
      %s25 = sadd.s32 1, %s20
      %p26 = scmp.ge.s32.totalorder %s25, 2
      %s27 = scalar_select %p26, 0, %s25
      %s28 = sadd.s32 1, %s19
      %s29 = scalar_select %p26, %s28, %s19
      %p30 = scmp.ge.s32.totalorder %s29, 2
      %s31 = scalar_select %p30, 0, %s29
      %s32 = ssub.s32 %s19, %s31
      %s33 = ssub.s32 %s20, %s27
      %s34 = sor.u32 %s32, %s33
      %p35 = scmp.eq.s32.totalorder %s34, 0
      %s37 = sadd.s32 %s36, 1
      %s38 = scalar_select %p35, %s36, %s37
      %p41 = pneg %p35
      %p42 = scmp.eq.s32.totalorder %s12, 3
      %p43 = por %p41, %p42
      %p44 = scmp.ne.s32.totalorder %s36, %s39
      %p45 = scmp.eq.s32.totalorder %s12, 0
      %p46 = por %p44, %p45
      %p47 = scmp.ne.s32.totalorder %s36, %s39
      %p48 = scmp.eq.s32.totalorder %s17, 3
      %p49 = por %p47, %p48
      %p50 = scmp.ne.s32.totalorder %s39, %s40
      %p51 = scmp.eq.s32.totalorder %s17, 0
      %p52 = por %p50, %p51
      %p53 = scmp.ne.s32.totalorder %s39, %s40
      %p54 = scmp.eq.s32.totalorder %s18, 3
      %p55 = por %p53, %p54
      %p57 = scmp.ne.s32.totalorder %s40, %s56
      %p58 = scmp.eq.s32.totalorder %s18, 0
      %p59 = por %p57, %p58
      %s60 = ssub.s32 %s19, %s31
      %s61 = ssub.s32 %s20, %s27
      %s62 = sor.u32 %s60, %s61
      %p63 = scmp.eq.s32.totalorder %s62, 0
      %s65 = sadd.s32 %s64, 1
      %s66 = scalar_select %p63, %s64, %s65
      %p69 = pneg %p63
      %p70 = scmp.eq.s32.totalorder %s12, 3
      %p71 = por %p69, %p70
      %p72 = scmp.ne.s32.totalorder %s64, %s67
      %p73 = scmp.eq.s32.totalorder %s12, 0
      %p74 = por %p72, %p73
      %p75 = scmp.ne.s32.totalorder %s64, %s67
      %p76 = scmp.eq.s32.totalorder %s17, 3
      %p77 = por %p75, %p76
      %p78 = scmp.ne.s32.totalorder %s67, %s68
      %p79 = scmp.eq.s32.totalorder %s17, 0
      %p80 = por %p78, %p79
      %p81 = scmp.ne.s32.totalorder %s67, %s68
      %p82 = scmp.eq.s32.totalorder %s18, 3
      %p83 = por %p81, %p82
      %p85 = scmp.ne.s32.totalorder %s68, %s84
      %p86 = scmp.eq.s32.totalorder %s18, 0
      %p87 = por %p85, %p86
      %s89 = sadd.s32 %s88, 1
      %p92 = scmp.eq.s32.totalorder %s12, 3
      %p93 = scmp.ne.s32.totalorder %s88, %s90
      %p94 = scmp.eq.s32.totalorder %s12, 0
      %p95 = por %p93, %p94
      %p96 = scmp.ne.s32.totalorder %s88, %s90
      %p97 = scmp.eq.s32.totalorder %s17, 3
      %p98 = por %p96, %p97
      %p99 = scmp.ne.s32.totalorder %s90, %s91
      %p100 = scmp.eq.s32.totalorder %s17, 0
      %p101 = por %p99, %p100
      %p102 = scmp.ne.s32.totalorder %s90, %s91
      %p103 = scmp.eq.s32.totalorder %s18, 3
      %p104 = por %p102, %p103
      %p106 = scmp.ne.s32.totalorder %s91, %s105
      %p107 = scmp.eq.s32.totalorder %s18, 0
      %p108 = por %p106, %p107
      %s110 = sadd.s32 %s109, 1
      %p113 = scmp.eq.s32.totalorder %s12, 3
      %p114 = scmp.ne.s32.totalorder %s109, %s111
      %p115 = scmp.eq.s32.totalorder %s12, 0
      %p116 = por %p114, %p115
      %p117 = scmp.ne.s32.totalorder %s109, %s111
      %p118 = scmp.eq.s32.totalorder %s17, 3
      %p119 = por %p117, %p118
      %p120 = scmp.ne.s32.totalorder %s111, %s112
      %p121 = scmp.eq.s32.totalorder %s17, 0
      %p122 = por %p120, %p121
      %p123 = scmp.ne.s32.totalorder %s111, %s112
      %p124 = scmp.eq.s32.totalorder %s18, 3
      %p125 = por %p123, %p124
      %p127 = scmp.ne.s32.totalorder %s112, %s126
      %p128 = scmp.eq.s32.totalorder %s18, 0
      %p129 = por %p127, %p128
      %s130 = ssub.s32 %s19, %s31
      %s131 = ssub.s32 %s20, %s27
      %s132 = sor.u32 %s130, %s131
      %p133 = scmp.eq.s32.totalorder %s132, 0
      %s135 = sadd.s32 %s134, 1
      %s136 = scalar_select %p133, %s134, %s135
      %p139 = pneg %p133
      %p140 = scmp.eq.s32.totalorder %s12, 3
      %p141 = por %p139, %p140
      %p142 = scmp.ne.s32.totalorder %s134, %s137
      %p143 = scmp.eq.s32.totalorder %s12, 0
      %p144 = por %p142, %p143
      %p145 = scmp.ne.s32.totalorder %s134, %s137
      %p146 = scmp.eq.s32.totalorder %s17, 3
      %p147 = por %p145, %p146
      %p148 = scmp.ne.s32.totalorder %s137, %s138
      %p149 = scmp.eq.s32.totalorder %s17, 0
      %p150 = por %p148, %p149
      %p151 = scmp.ne.s32.totalorder %s137, %s138
      %p152 = scmp.eq.s32.totalorder %s18, 3
      %p153 = por %p151, %p152
      %p155 = scmp.ne.s32.totalorder %s138, %s154
      %p156 = scmp.eq.s32.totalorder %s18, 0
      %p157 = por %p155, %p156
      %p158 = scmp.le.s32.totalorder 1, %s12
      %p159 = scmp.lt.s32.totalorder %s12, 5
      %p160 = pnand %p158, %p159
      %p161 = pneg %p160
      // Predicated region
      $region9: #{fused_conv_hardswish_sum.1} parent=5 // pred_check
        _
      $region10: #{fused_conv_hardswish_sum.1} parent=5 // pred_check_branch
        %163 = sbr.rel (%p160) target = $region12
      $region11: #{fused_conv_hardswish_sum.1} parent=5 // pred_region
        %s164 = ssub.s32 %s12, 1
        // Predicated region
        $region13: #{fused_conv_hardswish_sum.1} parent=11 // pred_check
          %p165 = pneg %p101
        $region14: #{fused_conv_hardswish_sum.1} parent=11 // pred_check_branch
          %167 = sbr.rel (%p165) target = $region16
        $region15: #{fused_conv_hardswish_sum.1} parent=11 // pred_region
          %s169 = ssub.s32 64, 64
          %170 = vsyncadd [#allocation5], %s169
          %s172 = sshll.u32 %s2, 4
          %s173 = int_to_ptr.vmem [resolvable:$true] %s172
          %175 = dma.vmem_to_smem %s173, 64, [#allocation4], [#allocation5]
        $region16: #{fused_conv_hardswish_sum.1} parent=11 // pred_fallthru
          _
        // Predicated region
        $region17: #{fused_conv_hardswish_sum.1} parent=11 // pred_check
          %p176 = pneg %p122
        $region18: #{fused_conv_hardswish_sum.1} parent=11 // pred_check_branch
          %178 = sbr.rel (%p176) target = $region20
        $region19: #{fused_conv_hardswish_sum.1} parent=11 // pred_region
          %s180 = ssub.s32 16, 16
          %181 = vsyncadd [#allocation7], %s180
          %s183 = sshll.u32 %s3, 4
          %s184 = int_to_ptr.vmem [resolvable:$true] %s183
          %186 = dma.vmem_to_smem %s184, 16, [#allocation6], [#allocation7]
        $region20: #{fused_conv_hardswish_sum.1} parent=11 // pred_fallthru
          _
      $region12: #{fused_conv_hardswish_sum.1} parent=5 // pred_fallthru
        _
      %p187 = scmp.lt.s32.totalorder %s12, 4
      // Predicated region
      $region21: #{fused_conv_hardswish_sum.1} parent=5 // pred_check
        %p188 = pneg %p187
      $region22: #{fused_conv_hardswish_sum.1} parent=5 // pred_check_branch
        %190 = sbr.rel (%p188) target = $region24
      $region23: #{fused_conv_hardswish_sum.1} parent=5 // pred_region
        // Predicated region
        $region25: #{fused_conv_hardswish_sum.1} parent=23 // pred_check
          %p191 = pneg %p46
        $region26: #{fused_conv_hardswish_sum.1} parent=23 // pred_check_branch
          %193 = sbr.rel (%p191) target = $region28
        $region27: #{fused_conv_hardswish_sum.1} parent=23 // pred_region
          %s194 = sand.u32 %s36, 1
          %s195 = sand.u32 %s36, 1
          %s196 = smul.addr %s195, 32
          %s197 = scalar_lea.vmem [#allocation2], %s196
          %s198 = smul.u32 2, %s20
          %s199 = smul.addr %s19, 8
          %s200 = sadd.s32 %s198, %s199
          %s201 = smul.addr %s200, 8
          %s202 = scalar_lea.vmem %s0, %s201
          // Predicated region
          $region29: #{fused_conv_hardswish_sum.1} parent=27 // pred_check
            _
          $region30: #{fused_conv_hardswish_sum.1} parent=27 // pred_check_branch
            %204 = sbr.rel (0) target = $region32
          $region31: #{fused_conv_hardswish_sum.1} parent=27 // pred_region
            // Predicated region
            $region33: #{fused_conv_hardswish_sum.1} parent=31 // pred_check
              _
            $region34: #{fused_conv_hardswish_sum.1} parent=31 // pred_check_branch
              %206 = sbr.rel (0) target = $region36
            $region35: #{fused_conv_hardswish_sum.1} parent=31 // pred_region
              // Predicated region
              $region48: #{fused_conv_hardswish_sum.1} parent=35 // pred_check
                _
              $region49: #{fused_conv_hardswish_sum.1} parent=35 // pred_check_branch
                %228 = sbr.rel (0) target = $region51
              $region50: #{fused_conv_hardswish_sum.1} parent=35 // pred_region
                loop: start=0, step=1, limit=1
                $region52: #{fused_conv_hardswish_sum.1} parent=50 // loop_pre_header
                  _
                $region53: #{fused_conv_hardswish_sum.1} parent=50 // loop_header
                  %s230 = sphi 0, %s234
                  %p231 = scmp.ge.s32.totalorder %s230, 1
                  %s235 = sphi %s202, %s202
                  %s236 = sphi %s197, %s197
                $region54: #{fused_conv_hardswish_sum.1} parent=50 // loop_header_branch
                  %233 = sbr.rel (%p231) target = $region58
                $region55: #{fused_conv_hardswish_sum.1} parent=50 // loop_body
                  %v237 = vld [vmem:[%s235] sm:$0xff]
                  %238 = vst [vmem:[%s236] sm:$0xff] %v237
                  %v239 = vld [vmem:[%s235 + $0x8] sm:$0xff]
                  %240 = vst [vmem:[%s236 + $0x8] sm:$0xff] %v239
                  %v241 = vld [vmem:[%s235 + $0x20] sm:$0xff]
                  %242 = vst [vmem:[%s236 + $0x10] sm:$0xff] %v241
                  %v243 = vld [vmem:[%s235 + $0x28] sm:$0xff]
                  %244 = vst [vmem:[%s236 + $0x18] sm:$0xff] %v243
                $region56: #{fused_conv_hardswish_sum.1} parent=50 // loop_footer
                  %s234 = sadd.s32 1, %s230
                $region57: #{fused_conv_hardswish_sum.1} parent=50 // loop_footer_branch
                  %229 = sbr.rel target = $region53
                $region58: #{fused_conv_hardswish_sum.1} parent=50 // loop_exit
                  _
              $region51: #{fused_conv_hardswish_sum.1} parent=35 // pred_fallthru
                _
              // Predicated region
              $region59: #{fused_conv_hardswish_sum.1} parent=35 // pred_check
                _
              $region60: #{fused_conv_hardswish_sum.1} parent=35 // pred_check_branch
                %246 = sbr.rel target = $region62
              $region61: #{fused_conv_hardswish_sum.1} parent=35 // pred_region
                _
              $region62: #{fused_conv_hardswish_sum.1} parent=35 // pred_fallthru
                _
            $region36: #{fused_conv_hardswish_sum.1} parent=31 // pred_fallthru
              _
            // Predicated region
            $region37: #{fused_conv_hardswish_sum.1} parent=31 // pred_check
              _
            $region38: #{fused_conv_hardswish_sum.1} parent=31 // pred_check_branch
              %208 = sbr.rel target = $region40
            $region39: #{fused_conv_hardswish_sum.1} parent=31 // pred_region
              %s210 = ssub.s32 256, 1
              loop: start=0, step=1, limit=1
              $region41: #{fused_conv_hardswish_sum.1} parent=39 // loop_pre_header
                _
              $region42: #{fused_conv_hardswish_sum.1} parent=39 // loop_header
                %s212 = sphi 0, %s216
                %p213 = scmp.ge.s32.totalorder %s212, 1
                %s217 = sphi %s202, %s202
                %s218 = sphi %s197, %s197
              $region43: #{fused_conv_hardswish_sum.1} parent=39 // loop_header_branch
                %215 = sbr.rel (%p213) target = $region47
              $region44: #{fused_conv_hardswish_sum.1} parent=39 // loop_body
                %v219 = vld [vmem:[%s217] sm:%s210]
                %220 = vst [vmem:[%s218] sm:%s210] %v219
                %v221 = vld [vmem:[%s217 + $0x8] sm:%s210]
                %222 = vst [vmem:[%s218 + $0x8] sm:%s210] %v221
                %v223 = vld [vmem:[%s217 + $0x20] sm:%s210]
                %224 = vst [vmem:[%s218 + $0x10] sm:%s210] %v223
                %v225 = vld [vmem:[%s217 + $0x28] sm:%s210]
                %226 = vst [vmem:[%s218 + $0x18] sm:%s210] %v225
              $region45: #{fused_conv_hardswish_sum.1} parent=39 // loop_footer
                %s216 = sadd.s32 1, %s212
              $region46: #{fused_conv_hardswish_sum.1} parent=39 // loop_footer_branch
                %211 = sbr.rel target = $region42
              $region47: #{fused_conv_hardswish_sum.1} parent=39 // loop_exit
                _
            $region40: #{fused_conv_hardswish_sum.1} parent=31 // pred_fallthru
              _
          $region32: #{fused_conv_hardswish_sum.1} parent=27 // pred_fallthru
            _
          %247 = vnop
        $region28: #{fused_conv_hardswish_sum.1} parent=23 // pred_fallthru
          _
        // Predicated region
        $region63: #{fused_conv_hardswish_sum.1} parent=23 // pred_check
          %p248 = pneg %p74
        $region64: #{fused_conv_hardswish_sum.1} parent=23 // pred_check_branch
          %250 = sbr.rel (%p248) target = $region66
        $region65: #{fused_conv_hardswish_sum.1} parent=23 // pred_region
          %s251 = sand.u32 %s64, 1
          %s252 = sand.u32 %s64, 1
          %s253 = smul.addr %s252, 32
          %s254 = scalar_lea.vmem [#allocation3], %s253
          %s255 = smul.u32 2, %s20
          %s256 = smul.addr %s19, 8
          %s257 = sadd.s32 %s255, %s256
          %s258 = smul.addr %s257, 8
          %s259 = scalar_lea.vmem %s1, %s258
          // Predicated region
          $region67: #{fused_conv_hardswish_sum.1} parent=65 // pred_check
            _
          $region68: #{fused_conv_hardswish_sum.1} parent=65 // pred_check_branch
            %261 = sbr.rel (0) target = $region70
          $region69: #{fused_conv_hardswish_sum.1} parent=65 // pred_region
            // Predicated region
            $region71: #{fused_conv_hardswish_sum.1} parent=69 // pred_check
              _
            $region72: #{fused_conv_hardswish_sum.1} parent=69 // pred_check_branch
              %263 = sbr.rel (0) target = $region74
            $region73: #{fused_conv_hardswish_sum.1} parent=69 // pred_region
              // Predicated region
              $region86: #{fused_conv_hardswish_sum.1} parent=73 // pred_check
                _
              $region87: #{fused_conv_hardswish_sum.1} parent=73 // pred_check_branch
                %285 = sbr.rel (0) target = $region89
              $region88: #{fused_conv_hardswish_sum.1} parent=73 // pred_region
                loop: start=0, step=1, limit=1
                $region90: #{fused_conv_hardswish_sum.1} parent=88 // loop_pre_header
                  _
                $region91: #{fused_conv_hardswish_sum.1} parent=88 // loop_header
                  %s287 = sphi 0, %s291
                  %p288 = scmp.ge.s32.totalorder %s287, 1
                  %s292 = sphi %s259, %s259
                  %s293 = sphi %s254, %s254
                $region92: #{fused_conv_hardswish_sum.1} parent=88 // loop_header_branch
                  %290 = sbr.rel (%p288) target = $region96
                $region93: #{fused_conv_hardswish_sum.1} parent=88 // loop_body
                  %v294 = vld [vmem:[%s292] sm:$0xff]
                  %295 = vst [vmem:[%s293] sm:$0xff] %v294
                  %v296 = vld [vmem:[%s292 + $0x8] sm:$0xff]
                  %297 = vst [vmem:[%s293 + $0x8] sm:$0xff] %v296
                  %v298 = vld [vmem:[%s292 + $0x20] sm:$0xff]
                  %299 = vst [vmem:[%s293 + $0x10] sm:$0xff] %v298
                  %v300 = vld [vmem:[%s292 + $0x28] sm:$0xff]
                  %301 = vst [vmem:[%s293 + $0x18] sm:$0xff] %v300
                $region94: #{fused_conv_hardswish_sum.1} parent=88 // loop_footer
                  %s291 = sadd.s32 1, %s287
                $region95: #{fused_conv_hardswish_sum.1} parent=88 // loop_footer_branch
                  %286 = sbr.rel target = $region91
                $region96: #{fused_conv_hardswish_sum.1} parent=88 // loop_exit
                  _
              $region89: #{fused_conv_hardswish_sum.1} parent=73 // pred_fallthru
                _
              // Predicated region
              $region97: #{fused_conv_hardswish_sum.1} parent=73 // pred_check
                _
              $region98: #{fused_conv_hardswish_sum.1} parent=73 // pred_check_branch
                %303 = sbr.rel target = $region100
              $region99: #{fused_conv_hardswish_sum.1} parent=73 // pred_region
                _
              $region100: #{fused_conv_hardswish_sum.1} parent=73 // pred_fallthru
                _
            $region74: #{fused_conv_hardswish_sum.1} parent=69 // pred_fallthru
              _
            // Predicated region
            $region75: #{fused_conv_hardswish_sum.1} parent=69 // pred_check
              _
            $region76: #{fused_conv_hardswish_sum.1} parent=69 // pred_check_branch
              %265 = sbr.rel target = $region78
            $region77: #{fused_conv_hardswish_sum.1} parent=69 // pred_region
              %s267 = ssub.s32 256, 1
              loop: start=0, step=1, limit=1
              $region79: #{fused_conv_hardswish_sum.1} parent=77 // loop_pre_header
                _
              $region80: #{fused_conv_hardswish_sum.1} parent=77 // loop_header
                %s269 = sphi 0, %s273
                %p270 = scmp.ge.s32.totalorder %s269, 1
                %s274 = sphi %s259, %s259
                %s275 = sphi %s254, %s254
              $region81: #{fused_conv_hardswish_sum.1} parent=77 // loop_header_branch
                %272 = sbr.rel (%p270) target = $region85
              $region82: #{fused_conv_hardswish_sum.1} parent=77 // loop_body
                %v276 = vld [vmem:[%s274] sm:%s267]
                %277 = vst [vmem:[%s275] sm:%s267] %v276
                %v278 = vld [vmem:[%s274 + $0x8] sm:%s267]
                %279 = vst [vmem:[%s275 + $0x8] sm:%s267] %v278
                %v280 = vld [vmem:[%s274 + $0x20] sm:%s267]
                %281 = vst [vmem:[%s275 + $0x10] sm:%s267] %v280
                %v282 = vld [vmem:[%s274 + $0x28] sm:%s267]
                %283 = vst [vmem:[%s275 + $0x18] sm:%s267] %v282
              $region83: #{fused_conv_hardswish_sum.1} parent=77 // loop_footer
                %s273 = sadd.s32 1, %s269
              $region84: #{fused_conv_hardswish_sum.1} parent=77 // loop_footer_branch
                %268 = sbr.rel target = $region80
              $region85: #{fused_conv_hardswish_sum.1} parent=77 // loop_exit
                _
            $region78: #{fused_conv_hardswish_sum.1} parent=69 // pred_fallthru
              _
          $region70: #{fused_conv_hardswish_sum.1} parent=65 // pred_fallthru
            _
          %304 = vnop
        $region66: #{fused_conv_hardswish_sum.1} parent=23 // pred_fallthru
          _
      $region24: #{fused_conv_hardswish_sum.1} parent=5 // pred_fallthru
        _
      %p305 = scmp.le.s32.totalorder 1, %s12
      %p306 = scmp.lt.s32.totalorder %s12, 5
      %p307 = pnand %p305, %p306
      %p308 = pneg %p307
      // Predicated region
      $region101: #{fused_conv_hardswish_sum.1} parent=5 // pred_check
        _
      $region102: #{fused_conv_hardswish_sum.1} parent=5 // pred_check_branch
        %310 = sbr.rel (%p307) target = $region104
      $region103: #{fused_conv_hardswish_sum.1} parent=5 // pred_region
        %s311 = ssub.s32 %s12, 1
        %s312 = sand.u32 %s39, 1
        %s313 = sand.u32 %s39, 1
        %s314 = smul.addr %s313, 32
        %s315 = scalar_lea.vmem [#allocation2], %s314
        // Predicated region
        $region105: #{fused_conv_hardswish_sum.1} parent=103 // pred_check
          %p316 = pneg %p52
        $region106: #{fused_conv_hardswish_sum.1} parent=103 // pred_check_branch
          %318 = sbr.rel (%p316) target = $region108
        $region107: #{fused_conv_hardswish_sum.1} parent=103 // pred_region
          _
        $region108: #{fused_conv_hardswish_sum.1} parent=103 // pred_fallthru
          _
        %s319 = sand.u32 %s67, 1
        %s320 = sand.u32 %s67, 1
        %s321 = smul.addr %s320, 32
        %s322 = scalar_lea.vmem [#allocation3], %s321
        // Predicated region
        $region109: #{fused_conv_hardswish_sum.1} parent=103 // pred_check
          %p323 = pneg %p80
        $region110: #{fused_conv_hardswish_sum.1} parent=103 // pred_check_branch
          %325 = sbr.rel (%p323) target = $region112
        $region111: #{fused_conv_hardswish_sum.1} parent=103 // pred_region
          _
        $region112: #{fused_conv_hardswish_sum.1} parent=103 // pred_fallthru
          _
        // Predicated region
        $region113: #{fused_conv_hardswish_sum.1} parent=103 // pred_check
          %p326 = pneg %p101
        $region114: #{fused_conv_hardswish_sum.1} parent=103 // pred_check_branch
          %328 = sbr.rel (%p326) target = $region116
        $region115: #{fused_conv_hardswish_sum.1} parent=103 // pred_region
          %329 = dma.done [#allocation5], 64
        $region116: #{fused_conv_hardswish_sum.1} parent=103 // pred_fallthru
          _
        // Predicated region
        $region117: #{fused_conv_hardswish_sum.1} parent=103 // pred_check
          %p330 = pneg %p122
        $region118: #{fused_conv_hardswish_sum.1} parent=103 // pred_check_branch
          %332 = sbr.rel (%p330) target = $region120
        $region119: #{fused_conv_hardswish_sum.1} parent=103 // pred_region
          %333 = dma.done [#allocation7], 16
        $region120: #{fused_conv_hardswish_sum.1} parent=103 // pred_fallthru
          _
        %334 = sfence
        %s335 = sand.u32 %s39, 1
        %s336 = sand.u32 %s39, 1
        %s337 = smul.addr %s336, 32
        %s338 = scalar_lea.vmem [#allocation2], %s337
        %p339 = pneg %p52
        %p340 = pneg %p49
        %s341 = sand.u32 %s67, 1
        %s342 = sand.u32 %s67, 1
        %s343 = smul.addr %s342, 32
        %s344 = scalar_lea.vmem [#allocation3], %s343
        %p345 = pneg %p80
        %p346 = pneg %p77
        %p347 = pneg %p101
        %p348 = pneg %p98
        %p349 = pneg %p122
        %p350 = pneg %p119
        %p351 = pneg %p150
        %p352 = pneg %p147
        %s353 = sand.u32 %s137, 1
        %s354 = sand.u32 %s137, 1
        %s355 = smul.addr %s354, 48
        %s356 = scalar_lea.vmem [#allocation8], %s355
        %s357 = smul.u32 2, %s22
        %s358 = smul.u32 2, %s22
        %s359 = smul.u32 2, %s22
        %v360 = vld [vmem:[%s315] sm:$0xff]
        %v361 = vld [vmem:[%s315 + $0x8] sm:$0xff]
        %v362 = vld [vmem:[%s315 + $0x10] sm:$0xff]
        %v363 = vld [vmem:[%s315 + $0x18] sm:$0xff]
        %v364 = vld [vmem:[%s322] sm:$0xff]
        %v365 = vld [vmem:[%s322 + $0x8] sm:$0xff]
        %v366 = vld [vmem:[%s322 + $0x10] sm:$0xff]
        %v367 = vld [vmem:[%s322 + $0x18] sm:$0xff]
        %s368 = sld [smem:[#allocation4]]
        %v369 = vstv %s368
        %v370 = vmul.f32 %v360, %v369
        %v371 = vmul.f32 %v361, %v369
        %v372 = vmul.f32 %v364, %v369
        %v373 = vmul.f32 %v365, %v369
        %s374 = sld [smem:[#allocation4 + $0x1]]
        %v375 = vstv %s374
        %v376 = vmul.f32 %v362, %v375
        %v377 = vmul.f32 %v363, %v375
        %v378 = vadd.f32 %v370, %v376
        %v379 = vadd.f32 %v371, %v377
        %v380 = vmul.f32 %v366, %v375
        %v381 = vmul.f32 %v367, %v375
        %v382 = vadd.f32 %v372, %v380
        %v383 = vadd.f32 %v373, %v381
        %s384 = sld [smem:[#allocation6]]
        %v385 = vstv %s384
        %v386 = vadd.f32 %v378, %v385
        %v387 = vadd.f32 %v379, %v385
        %v388 = vadd.f32 %v382, %v385
        %v389 = vadd.f32 %v383, %v385
        %v390 = vadd.f32 %v386, 3.0
        %v391 = vadd.f32 %v387, 3.0
        %v392 = vmax.f32 %v390, 0.0
        %v393 = vmax.f32 %v391, 0.0
        %v394 = vmin.f32 %v392, 6.0
        %v395 = vmin.f32 %v393, 6.0
        %v396 = vmul.f32 %v386, %v394
        %v397 = vmul.f32 %v387, %v395
        %v398 = vmul.f32 %v396, 0.16666667
        %v399 = vmul.f32 %v397, 0.16666667
        %v400 = vadd.f32 %v388, 3.0
        %v401 = vadd.f32 %v389, 3.0
        %v402 = vmax.f32 %v400, 0.0
        %v403 = vmax.f32 %v401, 0.0
        %v404 = vmin.f32 %v402, 6.0
        %v405 = vmin.f32 %v403, 6.0
        %v406 = vmul.f32 %v388, %v404
        %v407 = vmul.f32 %v389, %v405
        %v408 = vmul.f32 %v406, 0.16666667
        %v409 = vmul.f32 %v407, 0.16666667
        %v410 = vadd.f32 %v398, %v408
        %v411 = vadd.f32 %v399, %v409
        %412 = vst [vmem:[%s356] sm:$0xff] %v410
        %413 = vst [vmem:[%s356 + $0x8] sm:$0xff] %v411
        %s414 = sld [smem:[#allocation4 + $0x80]]
        %v415 = vstv %s414
        %v416 = vmul.f32 %v360, %v415
        %v417 = vmul.f32 %v361, %v415
        %v418 = vmul.f32 %v364, %v415
        %v419 = vmul.f32 %v365, %v415
        %s420 = sld [smem:[#allocation4 + $0x81]]
        %v421 = vstv %s420
        %v422 = vmul.f32 %v362, %v421
        %v423 = vmul.f32 %v363, %v421
        %v424 = vadd.f32 %v416, %v422
        %v425 = vadd.f32 %v417, %v423
        %v426 = vmul.f32 %v366, %v421
        %v427 = vmul.f32 %v367, %v421
        %v428 = vadd.f32 %v418, %v426
        %v429 = vadd.f32 %v419, %v427
        %s430 = sld [smem:[#allocation6 + $0x1]]
        %v431 = vstv %s430
        %v432 = vadd.f32 %v424, %v431
        %v433 = vadd.f32 %v425, %v431
        %v434 = vadd.f32 %v428, %v431
        %v435 = vadd.f32 %v429, %v431
        %v436 = vadd.f32 %v432, 3.0
        %v437 = vadd.f32 %v433, 3.0
        %v438 = vmax.f32 %v436, 0.0
        %v439 = vmax.f32 %v437, 0.0
        %v440 = vmin.f32 %v438, 6.0
        %v441 = vmin.f32 %v439, 6.0
        %v442 = vmul.f32 %v432, %v440
        %v443 = vmul.f32 %v433, %v441
        %v444 = vmul.f32 %v442, 0.16666667
        %v445 = vmul.f32 %v443, 0.16666667
        %v446 = vadd.f32 %v434, 3.0
        %v447 = vadd.f32 %v435, 3.0
        %v448 = vmax.f32 %v446, 0.0
        %v449 = vmax.f32 %v447, 0.0
        %v450 = vmin.f32 %v448, 6.0
        %v451 = vmin.f32 %v449, 6.0
        %v452 = vmul.f32 %v434, %v450
        %v453 = vmul.f32 %v435, %v451
        %v454 = vmul.f32 %v452, 0.16666667
        %v455 = vmul.f32 %v453, 0.16666667
        %v456 = vadd.f32 %v444, %v454
        %v457 = vadd.f32 %v445, %v455
        %s458 = scalar_lea.vmem %s356, 16 [#allocation8]
        %459 = vst [vmem:[%s458] sm:$0xff] %v456
        %460 = vst [vmem:[%s458 + $0x8] sm:$0xff] %v457
        %s461 = sld [smem:[#allocation4 + $0x100]]
        %v462 = vstv %s461
        %v463 = vmul.f32 %v360, %v462
        %v464 = vmul.f32 %v361, %v462
        %v465 = vmul.f32 %v364, %v462
        %v466 = vmul.f32 %v365, %v462
        %s467 = sld [smem:[#allocation4 + $0x101]]
        %v468 = vstv %s467
        %v469 = vmul.f32 %v362, %v468
        %v470 = vmul.f32 %v363, %v468
        %v471 = vadd.f32 %v463, %v469
        %v472 = vadd.f32 %v464, %v470
        %v473 = vmul.f32 %v366, %v468
        %v474 = vmul.f32 %v367, %v468
        %v475 = vadd.f32 %v465, %v473
        %v476 = vadd.f32 %v466, %v474
        %s477 = sld [smem:[#allocation6 + $0x2]]
        %v478 = vstv %s477
        %v479 = vadd.f32 %v471, %v478
        %v480 = vadd.f32 %v472, %v478
        %v481 = vadd.f32 %v475, %v478
        %v482 = vadd.f32 %v476, %v478
        %v483 = vadd.f32 %v479, 3.0
        %v484 = vadd.f32 %v480, 3.0
        %v485 = vmax.f32 %v483, 0.0
        %v486 = vmax.f32 %v484, 0.0
        %v487 = vmin.f32 %v485, 6.0
        %v488 = vmin.f32 %v486, 6.0
        %v489 = vmul.f32 %v479, %v487
        %v490 = vmul.f32 %v480, %v488
        %v491 = vmul.f32 %v489, 0.16666667
        %v492 = vmul.f32 %v490, 0.16666667
        %v493 = vadd.f32 %v481, 3.0
        %v494 = vadd.f32 %v482, 3.0
        %v495 = vmax.f32 %v493, 0.0
        %v496 = vmax.f32 %v494, 0.0
        %v497 = vmin.f32 %v495, 6.0
        %v498 = vmin.f32 %v496, 6.0
        %v499 = vmul.f32 %v481, %v497
        %v500 = vmul.f32 %v482, %v498
        %v501 = vmul.f32 %v499, 0.16666667
        %v502 = vmul.f32 %v500, 0.16666667
        %v503 = vadd.f32 %v491, %v501
        %v504 = vadd.f32 %v492, %v502
        %s505 = scalar_lea.vmem %s356, 32 [#allocation8]
        %506 = vst [vmem:[%s505] sm:$0xff] %v503
        %507 = vst [vmem:[%s505 + $0x8] sm:$0xff] %v504
        %s508 = sand.u32 %s137, 1
        %s509 = sand.u32 %s137, 1
        %s510 = smul.addr %s509, 48
        %s511 = scalar_lea.vmem [#allocation8], %s510
        // Predicated region
        $region121: #{fused_conv_hardswish_sum.1} parent=103 // pred_check
          %p512 = pneg %p147
        $region122: #{fused_conv_hardswish_sum.1} parent=103 // pred_check_branch
          %514 = sbr.rel (%p512) target = $region124
        $region123: #{fused_conv_hardswish_sum.1} parent=103 // pred_region
          %s515 = smul.u32 2, %s22
          %s516 = smul.addr %s21, 12
          %s517 = sadd.s32 %s515, %s516
          %s518 = smul.addr %s517, 8
          %s519 = scalar_lea.vmem %s4, %s518
          // Predicated region
          $region125: #{fused_conv_hardswish_sum.1} parent=123 // pred_check
            _
          $region126: #{fused_conv_hardswish_sum.1} parent=123 // pred_check_branch
            %521 = sbr.rel (0) target = $region128
          $region127: #{fused_conv_hardswish_sum.1} parent=123 // pred_region
            // Predicated region
            $region129: #{fused_conv_hardswish_sum.1} parent=127 // pred_check
              _
            $region130: #{fused_conv_hardswish_sum.1} parent=127 // pred_check_branch
              %523 = sbr.rel (0) target = $region132
            $region131: #{fused_conv_hardswish_sum.1} parent=127 // pred_region
              // Predicated region
              $region144: #{fused_conv_hardswish_sum.1} parent=131 // pred_check
                _
              $region145: #{fused_conv_hardswish_sum.1} parent=131 // pred_check_branch
                %549 = sbr.rel (0) target = $region147
              $region146: #{fused_conv_hardswish_sum.1} parent=131 // pred_region
                loop: start=0, step=1, limit=1
                $region148: #{fused_conv_hardswish_sum.1} parent=146 // loop_pre_header
                  _
                $region149: #{fused_conv_hardswish_sum.1} parent=146 // loop_header
                  %s551 = sphi 0, %s555
                  %p552 = scmp.ge.s32.totalorder %s551, 1
                  %s556 = sphi %s511, %s511
                  %s557 = sphi %s519, %s519
                $region150: #{fused_conv_hardswish_sum.1} parent=146 // loop_header_branch
                  %554 = sbr.rel (%p552) target = $region154
                $region151: #{fused_conv_hardswish_sum.1} parent=146 // loop_body
                  %v558 = vld [vmem:[%s556] sm:$0xff]
                  %559 = vst [vmem:[%s557] sm:$0xff] %v558
                  %v560 = vld [vmem:[%s556 + $0x8] sm:$0xff]
                  %561 = vst [vmem:[%s557 + $0x8] sm:$0xff] %v560
                  %v562 = vld [vmem:[%s556 + $0x10] sm:$0xff]
                  %563 = vst [vmem:[%s557 + $0x20] sm:$0xff] %v562
                  %v564 = vld [vmem:[%s556 + $0x18] sm:$0xff]
                  %565 = vst [vmem:[%s557 + $0x28] sm:$0xff] %v564
                  %v566 = vld [vmem:[%s556 + $0x20] sm:$0xff]
                  %567 = vst [vmem:[%s557 + $0x40] sm:$0xff] %v566
                  %v568 = vld [vmem:[%s556 + $0x28] sm:$0xff]
                  %569 = vst [vmem:[%s557 + $0x48] sm:$0xff] %v568
                $region152: #{fused_conv_hardswish_sum.1} parent=146 // loop_footer
                  %s555 = sadd.s32 1, %s551
                $region153: #{fused_conv_hardswish_sum.1} parent=146 // loop_footer_branch
                  %550 = sbr.rel target = $region149
                $region154: #{fused_conv_hardswish_sum.1} parent=146 // loop_exit
                  _
              $region147: #{fused_conv_hardswish_sum.1} parent=131 // pred_fallthru
                _
              // Predicated region
              $region155: #{fused_conv_hardswish_sum.1} parent=131 // pred_check
                _
              $region156: #{fused_conv_hardswish_sum.1} parent=131 // pred_check_branch
                %571 = sbr.rel target = $region158
              $region157: #{fused_conv_hardswish_sum.1} parent=131 // pred_region
                _
              $region158: #{fused_conv_hardswish_sum.1} parent=131 // pred_fallthru
                _
            $region132: #{fused_conv_hardswish_sum.1} parent=127 // pred_fallthru
              _
            // Predicated region
            $region133: #{fused_conv_hardswish_sum.1} parent=127 // pred_check
              _
            $region134: #{fused_conv_hardswish_sum.1} parent=127 // pred_check_branch
              %525 = sbr.rel target = $region136
            $region135: #{fused_conv_hardswish_sum.1} parent=127 // pred_region
              %s527 = ssub.s32 256, 1
              loop: start=0, step=1, limit=1
              $region137: #{fused_conv_hardswish_sum.1} parent=135 // loop_pre_header
                _
              $region138: #{fused_conv_hardswish_sum.1} parent=135 // loop_header
                %s529 = sphi 0, %s533
                %p530 = scmp.ge.s32.totalorder %s529, 1
                %s534 = sphi %s511, %s511
                %s535 = sphi %s519, %s519
              $region139: #{fused_conv_hardswish_sum.1} parent=135 // loop_header_branch
                %532 = sbr.rel (%p530) target = $region143
              $region140: #{fused_conv_hardswish_sum.1} parent=135 // loop_body
                %v536 = vld [vmem:[%s534] sm:%s527]
                %537 = vst [vmem:[%s535] sm:%s527] %v536
                %v538 = vld [vmem:[%s534 + $0x8] sm:%s527]
                %539 = vst [vmem:[%s535 + $0x8] sm:%s527] %v538
                %v540 = vld [vmem:[%s534 + $0x10] sm:%s527]
                %541 = vst [vmem:[%s535 + $0x20] sm:%s527] %v540
                %v542 = vld [vmem:[%s534 + $0x18] sm:%s527]
                %543 = vst [vmem:[%s535 + $0x28] sm:%s527] %v542
                %v544 = vld [vmem:[%s534 + $0x20] sm:%s527]
                %545 = vst [vmem:[%s535 + $0x40] sm:%s527] %v544
                %v546 = vld [vmem:[%s534 + $0x28] sm:%s527]
                %547 = vst [vmem:[%s535 + $0x48] sm:%s527] %v546
              $region141: #{fused_conv_hardswish_sum.1} parent=135 // loop_footer
                %s533 = sadd.s32 1, %s529
              $region142: #{fused_conv_hardswish_sum.1} parent=135 // loop_footer_branch
                %528 = sbr.rel target = $region138
              $region143: #{fused_conv_hardswish_sum.1} parent=135 // loop_exit
                _
            $region136: #{fused_conv_hardswish_sum.1} parent=127 // pred_fallthru
              _
          $region128: #{fused_conv_hardswish_sum.1} parent=123 // pred_fallthru
            _
          %572 = vnop
        $region124: #{fused_conv_hardswish_sum.1} parent=103 // pred_fallthru
          _
      $region104: #{fused_conv_hardswish_sum.1} parent=5 // pred_fallthru
        _
      %p573 = scmp.le.s32.totalorder 2, %s12
      // Predicated region
      $region159: #{fused_conv_hardswish_sum.1} parent=5 // pred_check
        %p574 = pneg %p573
      $region160: #{fused_conv_hardswish_sum.1} parent=5 // pred_check_branch
        %576 = sbr.rel (%p574) target = $region162
      $region161: #{fused_conv_hardswish_sum.1} parent=5 // pred_region
        %s577 = ssub.s32 %s12, 2
        // Predicated region
        $region163: #{fused_conv_hardswish_sum.1} parent=161 // pred_check
          %p578 = pneg %p153
        $region164: #{fused_conv_hardswish_sum.1} parent=161 // pred_check_branch
          %580 = sbr.rel (%p578) target = $region166
        $region165: #{fused_conv_hardswish_sum.1} parent=161 // pred_region
          %s581 = sand.u32 %s138, 1
          %s582 = sand.u32 %s138, 1
          %s583 = smul.addr %s582, 48
          %s584 = scalar_lea.vmem [#allocation8], %s583
        $region166: #{fused_conv_hardswish_sum.1} parent=161 // pred_fallthru
          _
      $region162: #{fused_conv_hardswish_sum.1} parent=5 // pred_fallthru
        _
    $region6: #{fused_conv_hardswish_sum.1} parent=1 // loop_footer
      %s16 = sadd.s32 1, %s12
    $region7: #{fused_conv_hardswish_sum.1} parent=1 // loop_footer_branch
      %11 = sbr.rel target = $region3
    $region8: #{fused_conv_hardswish_sum.1} parent=1 // loop_exit
      _
    %585 = vsyncpa [#allocation5], 1
    %s586 = scalar_lea.sflag [#allocation5], 1
    %587 = vsyncpa %s586, 1
    %588 = vsyncpa [#allocation7], 1

</llo_original>
